<compile_context>
chip_gen: v7x
topology: tpu7x:2x2x1
jax: 0.10.0
libtpu: 0.0.40
codegen_flags: <defaults>
</compile_context>

<pallas_src>
import functools

import numpy as np
import jax
import jax.numpy as jnp
from jax.experimental import pallas as pl
from jax.experimental.pallas import tpu as pltpu

_TB = 128      # lane tile (batch block per grid step)
_CHUNK = 64    # sublane chunk of the lookup table (8 f32 vregs)


def cosine_beta_schedule_discrete(timesteps, s=0.008):
    """Cosine schedule as in the reference implementation (numpy, exact)."""
    steps = timesteps + 2
    x = np.linspace(0, steps, steps)
    alphas_cumprod = np.cos(0.5 * np.pi * (x / steps + s) / (1 + s)) ** 2
    alphas_cumprod = alphas_cumprod / alphas_cumprod[0]
    alphas = alphas_cumprod[1:] / alphas_cumprod[:-1]
    betas = 1 - alphas
    return betas.squeeze()


def _fused_lookup_kernel(t_ref, beta_ref, abar_ref, beta_out_ref, abar_out_ref,
                         *, timesteps, from_normalized, n_chunks, chunk):
    """beta_out[0,b] = betas[t_int[b]], abar_out[0,b] = alphas_bar[t_int[b]].

    t is (1, TB) on lanes; tables are (Lp, TB) resident in VMEM, values
    replicated across lanes; the one-hot compare is shared by both lookups.
    """
    if from_normalized:
        # (1, TB) float32 normalized timesteps.
        t_int = jnp.round(t_ref[...] * jnp.float32(timesteps)).astype(jnp.int32)
    else:
        # (1, TB) int32 integer timesteps (no float round trip).
        t_int = t_ref[...]
    # Clamp so out-of-range indices never silently hit the zero padding.
    t_int = jnp.clip(t_int, 0, timesteps)                          # (1, TB)

    tb = t_int.shape[1]
    # Hoisted chunk iota (sublane index within a chunk), reused every iteration.
    chunk_iota = jax.lax.broadcasted_iota(jnp.int32, (chunk, tb), 0)

    def body(c, carry):
        acc_b, acc_a = carry
        base = pl.multiple_of(c * chunk, chunk)
        # Shared one-hot mask for this chunk: compare (VPU).
        mask = chunk_iota == (t_int - c * chunk)                   # (chunk, TB)
        b_chunk = beta_ref[pl.ds(base, chunk), :]                  # (chunk, TB)
        a_chunk = abar_ref[pl.ds(base, chunk), :]                  # (chunk, TB)
        # select (VPU) + sublane reduce (XLU) into (1, TB) accumulators.
        acc_b = acc_b + jnp.sum(jnp.where(mask, b_chunk, 0.0), axis=0,
                                keepdims=True)
        acc_a = acc_a + jnp.sum(jnp.where(mask, a_chunk, 0.0), axis=0,
                                keepdims=True)
        return acc_b, acc_a

    zero = jnp.zeros((1, tb), jnp.float32)
    acc_b, acc_a = jax.lax.fori_loop(0, n_chunks, body, (zero, zero),
                                     unroll=(n_chunks <= 8))
    beta_out_ref[...] = acc_b
    abar_out_ref[...] = acc_a


class PredefinedNoiseScheduleDiscrete:
    """Predefined (non-learned) discrete noise schedule; lookups done in Pallas."""

    def __init__(self, noise_schedule, timesteps):
        assert noise_schedule == "cosine"
        self.timesteps = timesteps

        betas = cosine_beta_schedule_discrete(timesteps).astype(np.float32)  # (T+1,)
        self.betas = jnp.asarray(betas)
        alphas = (1.0 - np.clip(betas, 0.0, 0.9999)).astype(np.float32)
        log_alpha_bar = np.cumsum(np.log(alphas)).astype(np.float32)
        self.alphas = jnp.asarray(alphas)
        alphas_bar = np.exp(log_alpha_bar).astype(np.float32)
        self.alphas_bar = jnp.asarray(alphas_bar)

        # Lookup tables padded to a multiple of the sublane chunk and
        # pre-broadcast across the full lane width (full-lane contiguous DMA,
        # no in-kernel lane broadcast).
        L = betas.shape[0]
        Lp = max(_CHUNK, ((L + _CHUNK - 1) // _CHUNK) * _CHUNK)
        self._Lp = Lp
        self._n_chunks = Lp // _CHUNK

        def _pad_table(vals):
            tbl = np.zeros((Lp, _TB), dtype=np.float32)
            tbl[:L, :] = np.asarray(vals, dtype=np.float32)[:, None]
            return jnp.asarray(tbl)

        self._betas_table = _pad_table(betas)
        self._abar_table = _pad_table(alphas_bar)

    # ------------------------------------------------------------------ #

    def _run(self, t_flat, from_normalized):
        """t_flat: 1-D array (float32 if from_normalized else int32)."""
        B = t_flat.shape[0]
        Bp = max(_TB, ((B + _TB - 1) // _TB) * _TB)
        if Bp != B:
            t_flat = jnp.pad(t_flat, (0, Bp - B))
        t_row = t_flat.reshape(1, Bp)

        kernel = functools.partial(
            _fused_lookup_kernel,
            timesteps=self.timesteps,
            from_normalized=from_normalized,
            n_chunks=self._n_chunks,
            chunk=_CHUNK,
        )
        Lp = self._Lp
        beta_out, abar_out = pl.pallas_call(
            kernel,
            out_shape=(jax.ShapeDtypeStruct((1, Bp), jnp.float32),
                       jax.ShapeDtypeStruct((1, Bp), jnp.float32)),
            grid=(Bp // _TB,),
            in_specs=[
                pl.BlockSpec((1, _TB), lambda i: (0, i)),     # t (lane blocks)
                pl.BlockSpec((Lp, _TB), lambda i: (0, 0)),    # betas table (resident)
                pl.BlockSpec((Lp, _TB), lambda i: (0, 0)),    # alphas_bar table (resident)
            ],
            out_specs=(
                pl.BlockSpec((1, _TB), lambda i: (0, i)),
                pl.BlockSpec((1, _TB), lambda i: (0, i)),
            ),
            compiler_params=pltpu.CompilerParams(
                dimension_semantics=("parallel",)),
        )(t_row, self._betas_table, self._abar_table)

        beta_out = beta_out.reshape(Bp)
        abar_out = abar_out.reshape(Bp)
        if Bp != B:
            beta_out = beta_out[:B]
            abar_out = abar_out[:B]
        return beta_out, abar_out

    def _prepare_t(self, t_normalized, t_int):
        assert int(t_normalized is None) + int(t_int is None) == 1
        if t_int is None:
            t = jnp.asarray(t_normalized, dtype=jnp.float32)
            return t, True
        t = jnp.asarray(t_int).astype(jnp.int32)
        return t, False

    # ---- public API (mirrors the PyTorch module) --------------------- #

    def forward(self, t_normalized=None, t_int=None):
        t, norm = self._prepare_t(t_normalized, t_int)
        beta, _ = self._run(t.reshape(-1), norm)
        return beta.reshape(t.shape)

    def get_alpha_bar(self, t_normalized=None, t_int=None):
        t, norm = self._prepare_t(t_normalized, t_int)
        _, abar = self._run(t.reshape(-1), norm)
        return abar.reshape(t.shape)

    def forward_and_alpha_bar(self, t_normalized=None, t_int=None):
        """Fused: beta_t and alpha_bar_t from a single kernel launch."""
        t, norm = self._prepare_t(t_normalized, t_int)
        beta, abar = self._run(t.reshape(-1), norm)
        return beta.reshape(t.shape), abar.reshape(t.shape)

    def __call__(self, t_normalized=None, t_int=None):
        return self.forward(t_normalized=t_normalized, t_int=t_int)


if __name__ == "__main__":
    timesteps = 130   # Lp = 192 -> 3 sublane chunks, exercises the fori_loop
    batch = 8

    sched = PredefinedNoiseScheduleDiscrete("cosine", timesteps)

    key = jax.random.PRNGKey(0)
    t_normalized = jax.random.uniform(key, (batch, 1), dtype=jnp.float32)

    # Normalized path (shape-preserving (B, 1) output).
    out = jax.block_until_ready(sched(t_normalized=t_normalized))
    betas_np = cosine_beta_schedule_discrete(timesteps).astype(np.float32)
    alphas_np = (1.0 - np.clip(betas_np, 0.0, 0.9999)).astype(np.float32)
    alphas_bar_np = np.exp(np.cumsum(np.log(alphas_np))).astype(np.float32)
    t_int_ref = np.round(np.asarray(t_normalized) * timesteps).astype(np.int64)
    ref = betas_np[t_int_ref]
    assert out.shape == t_normalized.shape
    np.testing.assert_allclose(np.asarray(out), ref, rtol=1e-6, atol=1e-6)

    # Integer path (1-D int input -> 1-D output, int stays int end-to-end).
    t_int = jnp.arange(batch, dtype=jnp.int32) % (timesteps + 1)
    out2 = jax.block_until_ready(sched(t_int=t_int))
    ref2 = betas_np[np.asarray(t_int)]
    assert out2.shape == t_int.shape
    np.testing.assert_allclose(np.asarray(out2), ref2, rtol=1e-6, atol=1e-6)

    # alpha_bar lookup (same fused kernel, second output).
    ab = jax.block_until_ready(sched.get_alpha_bar(t_int=t_int))
    ref_ab = alphas_bar_np[np.asarray(t_int)]
    np.testing.assert_allclose(np.asarray(ab), ref_ab, rtol=1e-6, atol=1e-6)

    # Fused single-launch path returning both.
    b_f, ab_f = sched.forward_and_alpha_bar(t_normalized=t_normalized)
    b_f, ab_f = jax.block_until_ready((b_f, ab_f))
    np.testing.assert_allclose(np.asarray(b_f), betas_np[t_int_ref],
                               rtol=1e-6, atol=1e-6)
    np.testing.assert_allclose(np.asarray(ab_f), alphas_bar_np[t_int_ref],
                               rtol=1e-6, atol=1e-6)

    print("KERNEL_OK")
</pallas_src>

<mosaic_0001>
module attributes {stable_mosaic.version = 11 : i64} {
  func.func @_fused_lookup_kernel(%arg0: i32, %arg1: memref<1x128xf32, #tpu.memory_space<vmem>>, %arg2: memref<192x128xf32, #tpu.memory_space<vmem>>, %arg3: memref<192x128xf32, #tpu.memory_space<vmem>>, %arg4: memref<1x128xf32, #tpu.memory_space<vmem>>, %arg5: memref<1x128xf32, #tpu.memory_space<vmem>>) attributes {dimension_semantics = [#tpu.dimension_semantics<parallel>], iteration_bounds = array<i64: 1>, scalar_prefetch = 0 : i64, scratch_operands = 0 : i64, tpu.core_type = #tpu.core_type<tc>, window_params = [{transform_indices = @transform_0, window_bounds = array<i64: 1, 128>}, {pipeline_mode = #tpu.pipeline_mode<synchronous>, transform_indices = @transform_1, window_bounds = array<i64: 192, 128>}, {pipeline_mode = #tpu.pipeline_mode<synchronous>, transform_indices = @transform_2, window_bounds = array<i64: 192, 128>}, {transform_indices = @transform_3, window_bounds = array<i64: 1, 128>}, {transform_indices = @transform_4, window_bounds = array<i64: 1, 128>}]} {
    %c0 = arith.constant 0 : index
    %c0_0 = arith.constant 0 : index
    %0 = vector.load %arg1[%c0, %c0_0] : memref<1x128xf32, #tpu.memory_space<vmem>>, vector<1x128xf32>
    %cst = arith.constant 1.300000e+02 : f32
    %1 = vector.broadcast %cst : f32 to vector<1x128xf32>
    %2 = arith.mulf %0, %1 : vector<1x128xf32>
    %3 = math.roundeven %2 : vector<1x128xf32>
    %4 = arith.fptosi %3 : vector<1x128xf32> to vector<1x128xi32>
    %c0_i32 = arith.constant 0 : i32
    %c130_i32 = arith.constant 130 : i32
    %5 = vector.broadcast %c0_i32 : i32 to vector<1x128xi32>
    %6 = arith.maxsi %5, %4 : vector<1x128xi32>
    %7 = vector.broadcast %c130_i32 : i32 to vector<1x128xi32>
    %8 = arith.minsi %7, %6 : vector<1x128xi32>
    %9 = tpu.iota {dimensions = array<i32: 0>} : vector<64x128xi32>
    %cst_1 = arith.constant 0.000000e+00 : f32
    %10 = vector.broadcast %cst_1 : f32 to vector<1x128xf32>
    %c0_i32_2 = arith.constant 0 : i32
    %c64_i32 = arith.constant 64 : i32
    %11 = arith.muli %c0_i32_2, %c64_i32 : i32
    %12 = tpu.assume_multiple %11, 64 : i32
    %c64_i32_3 = arith.constant 64 : i32
    %13 = arith.muli %c0_i32_2, %c64_i32_3 : i32
    %14 = vector.broadcast %13 : i32 to vector<1x128xi32>
    %15 = arith.subi %8, %14 : vector<1x128xi32>
    %16 = vector.broadcast %15 : vector<1x128xi32> to vector<64x128xi32>
    %17 = arith.cmpi eq, %9, %16 : vector<64x128xi32>
    %18 = arith.index_cast %12 : i32 to index
    %c0_4 = arith.constant 0 : index
    %19 = vector.load %arg2[%18, %c0_4] : memref<192x128xf32, #tpu.memory_space<vmem>>, vector<64x128xf32>
    %20 = arith.index_cast %12 : i32 to index
    %c0_5 = arith.constant 0 : index
    %21 = vector.load %arg3[%20, %c0_5] : memref<192x128xf32, #tpu.memory_space<vmem>>, vector<64x128xf32>
    %cst_6 = arith.constant 0.000000e+00 : f32
    %22 = vector.broadcast %cst_6 : f32 to vector<64x128xf32>
    %23 = arith.select %17, %19, %22 : vector<64x128xi1>, vector<64x128xf32>
    %cst_7 = arith.constant dense<0.000000e+00> : vector<128xf32>
    %24 = vector.multi_reduction <add>, %23, %cst_7 [0] : vector<64x128xf32> to vector<128xf32>
    %25 = vector.shape_cast %24 : vector<128xf32> to vector<1x128xf32>
    %26 = arith.addf %10, %25 : vector<1x128xf32>
    %cst_8 = arith.constant 0.000000e+00 : f32
    %27 = vector.broadcast %cst_8 : f32 to vector<64x128xf32>
    %28 = arith.select %17, %21, %27 : vector<64x128xi1>, vector<64x128xf32>
    %cst_9 = arith.constant dense<0.000000e+00> : vector<128xf32>
    %29 = vector.multi_reduction <add>, %28, %cst_9 [0] : vector<64x128xf32> to vector<128xf32>
    %30 = vector.shape_cast %29 : vector<128xf32> to vector<1x128xf32>
    %31 = arith.addf %10, %30 : vector<1x128xf32>
    %c1_i32 = arith.constant 1 : i32
    %c64_i32_10 = arith.constant 64 : i32
    %32 = arith.muli %c1_i32, %c64_i32_10 : i32
    %33 = tpu.assume_multiple %32, 64 : i32
    %c64_i32_11 = arith.constant 64 : i32
    %34 = arith.muli %c1_i32, %c64_i32_11 : i32
    %35 = vector.broadcast %34 : i32 to vector<1x128xi32>
    %36 = arith.subi %8, %35 : vector<1x128xi32>
    %37 = vector.broadcast %36 : vector<1x128xi32> to vector<64x128xi32>
    %38 = arith.cmpi eq, %9, %37 : vector<64x128xi32>
    %39 = arith.index_cast %33 : i32 to index
    %c0_12 = arith.constant 0 : index
    %40 = vector.load %arg2[%39, %c0_12] : memref<192x128xf32, #tpu.memory_space<vmem>>, vector<64x128xf32>
    %41 = arith.index_cast %33 : i32 to index
    %c0_13 = arith.constant 0 : index
    %42 = vector.load %arg3[%41, %c0_13] : memref<192x128xf32, #tpu.memory_space<vmem>>, vector<64x128xf32>
    %cst_14 = arith.constant 0.000000e+00 : f32
    %43 = vector.broadcast %cst_14 : f32 to vector<64x128xf32>
    %44 = arith.select %38, %40, %43 : vector<64x128xi1>, vector<64x128xf32>
    %cst_15 = arith.constant dense<0.000000e+00> : vector<128xf32>
    %45 = vector.multi_reduction <add>, %44, %cst_15 [0] : vector<64x128xf32> to vector<128xf32>
    %46 = vector.shape_cast %45 : vector<128xf32> to vector<1x128xf32>
    %47 = arith.addf %26, %46 : vector<1x128xf32>
    %cst_16 = arith.constant 0.000000e+00 : f32
    %48 = vector.broadcast %cst_16 : f32 to vector<64x128xf32>
    %49 = arith.select %38, %42, %48 : vector<64x128xi1>, vector<64x128xf32>
    %cst_17 = arith.constant dense<0.000000e+00> : vector<128xf32>
    %50 = vector.multi_reduction <add>, %49, %cst_17 [0] : vector<64x128xf32> to vector<128xf32>
    %51 = vector.shape_cast %50 : vector<128xf32> to vector<1x128xf32>
    %52 = arith.addf %31, %51 : vector<1x128xf32>
    %c2_i32 = arith.constant 2 : i32
    %c64_i32_18 = arith.constant 64 : i32
    %53 = arith.muli %c2_i32, %c64_i32_18 : i32
    %54 = tpu.assume_multiple %53, 64 : i32
    %c64_i32_19 = arith.constant 64 : i32
    %55 = arith.muli %c2_i32, %c64_i32_19 : i32
    %56 = vector.broadcast %55 : i32 to vector<1x128xi32>
    %57 = arith.subi %8, %56 : vector<1x128xi32>
    %58 = vector.broadcast %57 : vector<1x128xi32> to vector<64x128xi32>
    %59 = arith.cmpi eq, %9, %58 : vector<64x128xi32>
    %60 = arith.index_cast %54 : i32 to index
    %c0_20 = arith.constant 0 : index
    %61 = vector.load %arg2[%60, %c0_20] : memref<192x128xf32, #tpu.memory_space<vmem>>, vector<64x128xf32>
    %62 = arith.index_cast %54 : i32 to index
    %c0_21 = arith.constant 0 : index
    %63 = vector.load %arg3[%62, %c0_21] : memref<192x128xf32, #tpu.memory_space<vmem>>, vector<64x128xf32>
    %cst_22 = arith.constant 0.000000e+00 : f32
    %64 = vector.broadcast %cst_22 : f32 to vector<64x128xf32>
    %65 = arith.select %59, %61, %64 : vector<64x128xi1>, vector<64x128xf32>
    %cst_23 = arith.constant dense<0.000000e+00> : vector<128xf32>
    %66 = vector.multi_reduction <add>, %65, %cst_23 [0] : vector<64x128xf32> to vector<128xf32>
    %67 = vector.shape_cast %66 : vector<128xf32> to vector<1x128xf32>
    %68 = arith.addf %47, %67 : vector<1x128xf32>
    %cst_24 = arith.constant 0.000000e+00 : f32
    %69 = vector.broadcast %cst_24 : f32 to vector<64x128xf32>
    %70 = arith.select %59, %63, %69 : vector<64x128xi1>, vector<64x128xf32>
    %cst_25 = arith.constant dense<0.000000e+00> : vector<128xf32>
    %71 = vector.multi_reduction <add>, %70, %cst_25 [0] : vector<64x128xf32> to vector<128xf32>
    %72 = vector.shape_cast %71 : vector<128xf32> to vector<1x128xf32>
    %73 = arith.addf %52, %72 : vector<1x128xf32>
    %c3_i32 = arith.constant 3 : i32
    %c0_26 = arith.constant 0 : index
    %c0_27 = arith.constant 0 : index
    %74 = vector.load %arg4[%c0_26, %c0_27] : memref<1x128xf32, #tpu.memory_space<vmem>>, vector<1x128xf32>
    tpu.vector_store %arg4[%c0_26, %c0_27], %68 {strides = array<i32>} : memref<1x128xf32, #tpu.memory_space<vmem>>, vector<1x128xf32>,
    %c0_28 = arith.constant 0 : index
    %c0_29 = arith.constant 0 : index
    %75 = vector.load %arg5[%c0_28, %c0_29] : memref<1x128xf32, #tpu.memory_space<vmem>>, vector<1x128xf32>
    tpu.vector_store %arg5[%c0_28, %c0_29], %73 {strides = array<i32>} : memref<1x128xf32, #tpu.memory_space<vmem>>, vector<1x128xf32>,
    return
  }
  func.func @transform_0(%arg0: i32) -> (i32, i32) {
    %c0_i32 = arith.constant 0 : i32
    %c0_i32_0 = arith.constant 0 : i32
    return %c0_i32, %arg0 : i32, i32
  }
  func.func @transform_1(%arg0: i32) -> (i32, i32) {
    %c0_i32 = arith.constant 0 : i32
    %c0_i32_0 = arith.constant 0 : i32
    %c0_i32_1 = arith.constant 0 : i32
    return %c0_i32, %c0_i32_0 : i32, i32
  }
  func.func @transform_2(%arg0: i32) -> (i32, i32) {
    %c0_i32 = arith.constant 0 : i32
    %c0_i32_0 = arith.constant 0 : i32
    %c0_i32_1 = arith.constant 0 : i32
    return %c0_i32, %c0_i32_0 : i32, i32
  }
  func.func @transform_3(%arg0: i32) -> (i32, i32) {
    %c0_i32 = arith.constant 0 : i32
    %c0_i32_0 = arith.constant 0 : i32
    return %c0_i32, %arg0 : i32, i32
  }
  func.func @transform_4(%arg0: i32) -> (i32, i32) {
    %c0_i32 = arith.constant 0 : i32
    %c0_i32_0 = arith.constant 0 : i32
    return %c0_i32, %arg0 : i32, i32
  }
}

</mosaic_0001>

<llo_original>
// kernel: tpu_custom_call.1
$region0: #{tpu_custom_call.1}
  #allocation0 [shape = 'u32[]', space=smem, size = 0x4, offset = 0x4, fixed_abs, tag = 'smem constant byte address 0x4 - core index']
  #allocation1 [shape = 'u32[144,128]{1,0:T(1,128)}', space=vmem, size = 0x12000, scoped, tag = 'internal scratch']
  %s0 = inlined_call_operand.hbm [shape: f32[1,128], index: 0, kind: input, shape index: {}]
  %s1 = inlined_call_operand.hbm [shape: f32[192,128], index: 1, kind: input, shape index: {}]
  %s2 = inlined_call_operand.hbm [shape: f32[192,128], index: 2, kind: input, shape index: {}]
  %s3 = inlined_call_operand.hbm [shape: f32[1,128], index: 3, kind: output, shape index: {0}]
  %s4 = inlined_call_operand.hbm [shape: f32[1,128], index: 4, kind: output, shape index: {1}]
  %5 = xla_tuple %s3, %s4
  %s6 = sld [smem:[#allocation0]]
  $region42: #{tpu_custom_call.1} parent=0
    _
  %s8 = ssub.s32 1, %s6
  %s9 = scalar_select 0, %s8, %s6
  $region1: #{tpu_custom_call.1} parent=0
    #allocation2 [shape = 'u8[512]{0}', space=vmem, size = 0x400, scoped, tag = 'input window, operand 0, single buffered']
    #allocation3 [shape = 's32[1]{0}', space=sflag, size = 0x4, scoped, tag = 'scoped memory for tpu_custom_call.1']
    #allocation4 [shape = 's32[1]{0}', space=sflag, size = 0x4, scoped, tag = 'scoped memory for tpu_custom_call.1']
    #allocation5 [shape = 'u8[98304]{0}', space=vmem, size = 0x18000, scoped, tag = 'input window, operand 1, single buffered']
    #allocation6 [shape = 's32[1]{0}', space=sflag, size = 0x4, scoped, tag = 'scoped memory for tpu_custom_call.1']
    #allocation7 [shape = 'u8[98304]{0}', space=vmem, size = 0x18000, scoped, tag = 'input window, operand 2, single buffered']
    #allocation8 [shape = 'u8[512]{0}', space=vmem, size = 0x400, scoped, tag = 'output window, operand 0, single buffered']
    #allocation9 [shape = 'u8[512]{0}', space=vmem, size = 0x400, scoped, tag = 'output window, operand 1, single buffered']
    #allocation10 [shape = 's32[1]{0}', space=sflag, size = 0x4, scoped, tag = 'scoped memory for tpu_custom_call.1']
    %10 = vsyncpa [#allocation3], 0
    %11 = vsyncpa [#allocation6], 0
    %12 = vsyncpa [#allocation4], 0
    %13 = vsyncpa [#allocation10], 0
    // Predicated region
    $region2: #{tpu_custom_call.1} parent=1 // pred_check
      _
    $region3: #{tpu_custom_call.1} parent=1 // pred_check_branch
      %15 = sbr.rel (0) target = $region5
    $region4: #{tpu_custom_call.1} parent=1 // pred_region
      %s17 = ssub.s32 16, 16
      %18 = vsyncadd [#allocation3], %s17
      %s20 = sshll.u32 [#allocation2], 4
      %s21 = int_to_ptr.vmem [resolvable:$true] %s20
      %23 = dma.hbm_to_vmem [thread:$0]  %s0, 16, %s21, [#allocation3]
    $region5: #{tpu_custom_call.1} parent=1 // pred_fallthru
      _
    // Predicated region
    $region6: #{tpu_custom_call.1} parent=1 // pred_check
      _
    $region7: #{tpu_custom_call.1} parent=1 // pred_check_branch
      %25 = sbr.rel (0) target = $region9
    $region8: #{tpu_custom_call.1} parent=1 // pred_region
      %s27 = ssub.s32 3072, 3072
      %28 = vsyncadd [#allocation6], %s27
      %s29 = sshll.u32 [#allocation5], 4
      %s30 = int_to_ptr.vmem [resolvable:$true] %s29
      %35 = dma.hbm_to_vmem [thread:$0]  %s1, 3072, %s30, [#allocation6], 128, 128, 8
    $region9: #{tpu_custom_call.1} parent=1 // pred_fallthru
      _
    // Predicated region
    $region10: #{tpu_custom_call.1} parent=1 // pred_check
      _
    $region11: #{tpu_custom_call.1} parent=1 // pred_check_branch
      %37 = sbr.rel (0) target = $region13
    $region12: #{tpu_custom_call.1} parent=1 // pred_region
      %s39 = ssub.s32 3072, 3072
      %40 = vsyncadd [#allocation6], %s39
      %s41 = sshll.u32 [#allocation7], 4
      %s42 = int_to_ptr.vmem [resolvable:$true] %s41
      %47 = dma.hbm_to_vmem [thread:$0]  %s2, 3072, %s42, [#allocation6], 128, 128, 8
    $region13: #{tpu_custom_call.1} parent=1 // pred_fallthru
      _
    // Predicated region
    $region14: #{tpu_custom_call.1} parent=1 // pred_check
      _
    $region15: #{tpu_custom_call.1} parent=1 // pred_check_branch
      %49 = sbr.rel (0) target = $region17
    $region16: #{tpu_custom_call.1} parent=1 // pred_region
      %50 = dma.done [#allocation3], 16
    $region17: #{tpu_custom_call.1} parent=1 // pred_fallthru
      _
    // Predicated region
    $region18: #{tpu_custom_call.1} parent=1 // pred_check
      _
    $region19: #{tpu_custom_call.1} parent=1 // pred_check_branch
      %52 = sbr.rel (0) target = $region21
    $region20: #{tpu_custom_call.1} parent=1 // pred_region
      %53 = dma.done [#allocation6], 3072
    $region21: #{tpu_custom_call.1} parent=1 // pred_fallthru
      _
    // Predicated region
    $region22: #{tpu_custom_call.1} parent=1 // pred_check
      _
    $region23: #{tpu_custom_call.1} parent=1 // pred_check_branch
      %55 = sbr.rel (0) target = $region25
    $region24: #{tpu_custom_call.1} parent=1 // pred_region
      %56 = dma.done [#allocation6], 3072
    $region25: #{tpu_custom_call.1} parent=1 // pred_fallthru
      _
    %v57 = vld [vmem:[#allocation2] sm:$0x1]
    %v58 = vmul.f32 %v57, 130.0
    %v59 = vcvt.f32.s32.ties.to.even %v58
    %vm60 = vcmp.gt.s32.totalorder %v59, 0
    %v61 = vsel %vm60, %v59, 0
    %vm62 = vcmp.lt.s32.totalorder %v61, 130
    %v63 = vsel %vm62, %v61, 130
    %v64 = vlaneseq
    %v65 = vshrl.u32 %v64, 7
    %v66 = vadd.s32 %v65, 8
    %v67 = vadd.s32 %v65, 16
    %v68 = vadd.s32 %v65, 24
    %v69 = vadd.s32 %v65, 32
    %v70 = vadd.s32 %v65, 40
    %v71 = vadd.s32 %v65, 48
    %v72 = vadd.s32 %v65, 56
    %v73 = vlaneseq
    %v74 = vshrl.u32 %v73, 7
    %v75 = vsub.s32 0, %v74
    %v76 = vrot.slane %v63, %v75
    %vm77 = vcmp.eq.s32.totalorder %v65, %v76
    %vm78 = vcmp.eq.s32.totalorder %v66, %v76
    %vm79 = vcmp.eq.s32.totalorder %v67, %v76
    %vm80 = vcmp.eq.s32.totalorder %v68, %v76
    %vm81 = vcmp.eq.s32.totalorder %v69, %v76
    %vm82 = vcmp.eq.s32.totalorder %v70, %v76
    %vm83 = vcmp.eq.s32.totalorder %v71, %v76
    %vm84 = vcmp.eq.s32.totalorder %v72, %v76
    %v85 = vld [vmem:[#allocation5] sm:$0xff]
    %v86 = vld [vmem:[#allocation5 + $0x8] sm:$0xff]
    %v87 = vld [vmem:[#allocation5 + $0x10] sm:$0xff]
    %v88 = vld [vmem:[#allocation5 + $0x18] sm:$0xff]
    %v89 = vld [vmem:[#allocation5 + $0x20] sm:$0xff]
    %v90 = vld [vmem:[#allocation5 + $0x28] sm:$0xff]
    %v91 = vld [vmem:[#allocation5 + $0x30] sm:$0xff]
    %v92 = vld [vmem:[#allocation5 + $0x38] sm:$0xff]
    %v93 = vld [vmem:[#allocation7] sm:$0xff]
    %v94 = vld [vmem:[#allocation7 + $0x8] sm:$0xff]
    %v95 = vld [vmem:[#allocation7 + $0x10] sm:$0xff]
    %v96 = vld [vmem:[#allocation7 + $0x18] sm:$0xff]
    %v97 = vld [vmem:[#allocation7 + $0x20] sm:$0xff]
    %v98 = vld [vmem:[#allocation7 + $0x28] sm:$0xff]
    %v99 = vld [vmem:[#allocation7 + $0x30] sm:$0xff]
    %v100 = vld [vmem:[#allocation7 + $0x38] sm:$0xff]
    %v101 = vsel %vm77, %v85, 0.0
    %v102 = vsel %vm78, %v86, 0.0
    %v103 = vsel %vm79, %v87, 0.0
    %v104 = vsel %vm80, %v88, 0.0
    %v105 = vsel %vm81, %v89, 0.0
    %v106 = vsel %vm82, %v90, 0.0
    %v107 = vsel %vm83, %v91, 0.0
    %v108 = vsel %vm84, %v92, 0.0
    %v109 = vadd.f32 %v101, %v102
    %v110 = vadd.f32 %v109, %v103
    %v111 = vadd.f32 %v110, %v104
    %v112 = vadd.f32 %v111, %v105
    %v113 = vadd.f32 %v112, %v106
    %v114 = vadd.f32 %v113, %v107
    %v115 = vadd.f32 %v114, %v108
    %v116 = vrot.slane %v115, 4
    %v117 = vadd.f32 %v115, %v116
    %v118 = vrot.slane %v117, 2
    %v119 = vadd.f32 %v117, %v118
    %v120 = vrot.slane %v119, 1
    %v121 = vadd.f32 %v119, %v120
    %v122 = vadd.f32 %v121, 0.0
    %v123 = vsel %vm77, %v93, 0.0
    %v124 = vsel %vm78, %v94, 0.0
    %v125 = vsel %vm79, %v95, 0.0
    %v126 = vsel %vm80, %v96, 0.0
    %v127 = vsel %vm81, %v97, 0.0
    %v128 = vsel %vm82, %v98, 0.0
    %v129 = vsel %vm83, %v99, 0.0
    %v130 = vsel %vm84, %v100, 0.0
    %v131 = vadd.f32 %v123, %v124
    %v132 = vadd.f32 %v131, %v125
    %v133 = vadd.f32 %v132, %v126
    %v134 = vadd.f32 %v133, %v127
    %v135 = vadd.f32 %v134, %v128
    %v136 = vadd.f32 %v135, %v129
    %v137 = vadd.f32 %v136, %v130
    %v138 = vrot.slane %v137, 4
    %v139 = vadd.f32 %v137, %v138
    %v140 = vrot.slane %v139, 2
    %v141 = vadd.f32 %v139, %v140
    %v142 = vrot.slane %v141, 1
    %v143 = vadd.f32 %v141, %v142
    %v144 = vadd.f32 %v143, 0.0
    %v145 = vsub.s32 %v63, 64
    %v146 = vlaneseq
    %v147 = vshrl.u32 %v146, 7
    %v148 = vsub.s32 0, %v147
    %v149 = vrot.slane %v145, %v148
    %vm150 = vcmp.eq.s32.totalorder %v65, %v149
    %vm151 = vcmp.eq.s32.totalorder %v66, %v149
    %vm152 = vcmp.eq.s32.totalorder %v67, %v149
    %vm153 = vcmp.eq.s32.totalorder %v68, %v149
    %vm154 = vcmp.eq.s32.totalorder %v69, %v149
    %vm155 = vcmp.eq.s32.totalorder %v70, %v149
    %vm156 = vcmp.eq.s32.totalorder %v71, %v149
    %vm157 = vcmp.eq.s32.totalorder %v72, %v149
    %s158 = scalar_lea.vmem [#allocation5], 64
    %v159 = vld [vmem:[%s158] sm:$0xff]
    %v160 = vld [vmem:[%s158 + $0x8] sm:$0xff]
    %v161 = vld [vmem:[%s158 + $0x10] sm:$0xff]
    %v162 = vld [vmem:[%s158 + $0x18] sm:$0xff]
    %v163 = vld [vmem:[%s158 + $0x20] sm:$0xff]
    %v164 = vld [vmem:[%s158 + $0x28] sm:$0xff]
    %v165 = vld [vmem:[%s158 + $0x30] sm:$0xff]
    %v166 = vld [vmem:[%s158 + $0x38] sm:$0xff]
    %s167 = scalar_lea.vmem [#allocation7], 64
    %v168 = vld [vmem:[%s167] sm:$0xff]
    %v169 = vld [vmem:[%s167 + $0x8] sm:$0xff]
    %v170 = vld [vmem:[%s167 + $0x10] sm:$0xff]
    %v171 = vld [vmem:[%s167 + $0x18] sm:$0xff]
    %v172 = vld [vmem:[%s167 + $0x20] sm:$0xff]
    %v173 = vld [vmem:[%s167 + $0x28] sm:$0xff]
    %v174 = vld [vmem:[%s167 + $0x30] sm:$0xff]
    %v175 = vld [vmem:[%s167 + $0x38] sm:$0xff]
    %v176 = vsel %vm150, %v159, 0.0
    %v177 = vsel %vm151, %v160, 0.0
    %v178 = vsel %vm152, %v161, 0.0
    %v179 = vsel %vm153, %v162, 0.0
    %v180 = vsel %vm154, %v163, 0.0
    %v181 = vsel %vm155, %v164, 0.0
    %v182 = vsel %vm156, %v165, 0.0
    %v183 = vsel %vm157, %v166, 0.0
    %v184 = vadd.f32 %v176, %v177
    %v185 = vadd.f32 %v184, %v178
    %v186 = vadd.f32 %v185, %v179
    %v187 = vadd.f32 %v186, %v180
    %v188 = vadd.f32 %v187, %v181
    %v189 = vadd.f32 %v188, %v182
    %v190 = vadd.f32 %v189, %v183
    %v191 = vrot.slane %v190, 4
    %v192 = vadd.f32 %v190, %v191
    %v193 = vrot.slane %v192, 2
    %v194 = vadd.f32 %v192, %v193
    %v195 = vrot.slane %v194, 1
    %v196 = vadd.f32 %v194, %v195
    %v197 = vadd.f32 %v122, %v196
    %v198 = vsel %vm150, %v168, 0.0
    %v199 = vsel %vm151, %v169, 0.0
    %v200 = vsel %vm152, %v170, 0.0
    %v201 = vsel %vm153, %v171, 0.0
    %v202 = vsel %vm154, %v172, 0.0
    %v203 = vsel %vm155, %v173, 0.0
    %v204 = vsel %vm156, %v174, 0.0
    %v205 = vsel %vm157, %v175, 0.0
    %v206 = vadd.f32 %v198, %v199
    %v207 = vadd.f32 %v206, %v200
    %v208 = vadd.f32 %v207, %v201
    %v209 = vadd.f32 %v208, %v202
    %v210 = vadd.f32 %v209, %v203
    %v211 = vadd.f32 %v210, %v204
    %v212 = vadd.f32 %v211, %v205
    %v213 = vrot.slane %v212, 4
    %v214 = vadd.f32 %v212, %v213
    %v215 = vrot.slane %v214, 2
    %v216 = vadd.f32 %v214, %v215
    %v217 = vrot.slane %v216, 1
    %v218 = vadd.f32 %v216, %v217
    %v219 = vadd.f32 %v144, %v218
    %v220 = vsub.s32 %v63, 128
    %v221 = vlaneseq
    %v222 = vshrl.u32 %v221, 7
    %v223 = vsub.s32 0, %v222
    %v224 = vrot.slane %v220, %v223
    %vm225 = vcmp.eq.s32.totalorder %v65, %v224
    %vm226 = vcmp.eq.s32.totalorder %v66, %v224
    %vm227 = vcmp.eq.s32.totalorder %v67, %v224
    %vm228 = vcmp.eq.s32.totalorder %v68, %v224
    %vm229 = vcmp.eq.s32.totalorder %v69, %v224
    %vm230 = vcmp.eq.s32.totalorder %v70, %v224
    %vm231 = vcmp.eq.s32.totalorder %v71, %v224
    %vm232 = vcmp.eq.s32.totalorder %v72, %v224
    %s233 = scalar_lea.vmem [#allocation5], 128
    %v234 = vld [vmem:[%s233] sm:$0xff]
    %v235 = vld [vmem:[%s233 + $0x8] sm:$0xff]
    %v236 = vld [vmem:[%s233 + $0x10] sm:$0xff]
    %v237 = vld [vmem:[%s233 + $0x18] sm:$0xff]
    %v238 = vld [vmem:[%s233 + $0x20] sm:$0xff]
    %v239 = vld [vmem:[%s233 + $0x28] sm:$0xff]
    %v240 = vld [vmem:[%s233 + $0x30] sm:$0xff]
    %v241 = vld [vmem:[%s233 + $0x38] sm:$0xff]
    %s242 = scalar_lea.vmem [#allocation7], 128
    %v243 = vld [vmem:[%s242] sm:$0xff]
    %v244 = vld [vmem:[%s242 + $0x8] sm:$0xff]
    %v245 = vld [vmem:[%s242 + $0x10] sm:$0xff]
    %v246 = vld [vmem:[%s242 + $0x18] sm:$0xff]
    %v247 = vld [vmem:[%s242 + $0x20] sm:$0xff]
    %v248 = vld [vmem:[%s242 + $0x28] sm:$0xff]
    %v249 = vld [vmem:[%s242 + $0x30] sm:$0xff]
    %v250 = vld [vmem:[%s242 + $0x38] sm:$0xff]
    %v251 = vsel %vm225, %v234, 0.0
    %v252 = vsel %vm226, %v235, 0.0
    %v253 = vsel %vm227, %v236, 0.0
    %v254 = vsel %vm228, %v237, 0.0
    %v255 = vsel %vm229, %v238, 0.0
    %v256 = vsel %vm230, %v239, 0.0
    %v257 = vsel %vm231, %v240, 0.0
    %v258 = vsel %vm232, %v241, 0.0
    %v259 = vadd.f32 %v251, %v252
    %v260 = vadd.f32 %v259, %v253
    %v261 = vadd.f32 %v260, %v254
    %v262 = vadd.f32 %v261, %v255
    %v263 = vadd.f32 %v262, %v256
    %v264 = vadd.f32 %v263, %v257
    %v265 = vadd.f32 %v264, %v258
    %v266 = vrot.slane %v265, 4
    %v267 = vadd.f32 %v265, %v266
    %v268 = vrot.slane %v267, 2
    %v269 = vadd.f32 %v267, %v268
    %v270 = vrot.slane %v269, 1
    %v271 = vadd.f32 %v269, %v270
    %v272 = vadd.f32 %v197, %v271
    %v273 = vsel %vm225, %v243, 0.0
    %v274 = vsel %vm226, %v244, 0.0
    %v275 = vsel %vm227, %v245, 0.0
    %v276 = vsel %vm228, %v246, 0.0
    %v277 = vsel %vm229, %v247, 0.0
    %v278 = vsel %vm230, %v248, 0.0
    %v279 = vsel %vm231, %v249, 0.0
    %v280 = vsel %vm232, %v250, 0.0
    %v281 = vadd.f32 %v273, %v274
    %v282 = vadd.f32 %v281, %v275
    %v283 = vadd.f32 %v282, %v276
    %v284 = vadd.f32 %v283, %v277
    %v285 = vadd.f32 %v284, %v278
    %v286 = vadd.f32 %v285, %v279
    %v287 = vadd.f32 %v286, %v280
    %v288 = vrot.slane %v287, 4
    %v289 = vadd.f32 %v287, %v288
    %v290 = vrot.slane %v289, 2
    %v291 = vadd.f32 %v289, %v290
    %v292 = vrot.slane %v291, 1
    %v293 = vadd.f32 %v291, %v292
    %v294 = vadd.f32 %v219, %v293
    %295 = vst [vmem:[#allocation8] sm:$0x1] %v272
    %296 = vst [vmem:[#allocation9] sm:$0x1] %v294
    // Predicated region
    $region26: #{tpu_custom_call.1} parent=1 // pred_check
      _
    $region27: #{tpu_custom_call.1} parent=1 // pred_check_branch
      %298 = sbr.rel (0) target = $region29
    $region28: #{tpu_custom_call.1} parent=1 // pred_region
      %s300 = ssub.s32 16, 16
      %301 = vsyncadd [#allocation4], %s300
      %s303 = sshll.u32 [#allocation8], 4
      %s304 = int_to_ptr.vmem [resolvable:$true] %s303
      %306 = dma.vmem_to_hbm [thread:$0]  %s304, 16, %s3, [#allocation4]
    $region29: #{tpu_custom_call.1} parent=1 // pred_fallthru
      _
    // Predicated region
    $region30: #{tpu_custom_call.1} parent=1 // pred_check
      _
    $region31: #{tpu_custom_call.1} parent=1 // pred_check_branch
      %308 = sbr.rel (0) target = $region33
    $region32: #{tpu_custom_call.1} parent=1 // pred_region
      %s310 = ssub.s32 16, 16
      %311 = vsyncadd [#allocation10], %s310
      %s313 = sshll.u32 [#allocation9], 4
      %s314 = int_to_ptr.vmem [resolvable:$true] %s313
      %316 = dma.vmem_to_hbm [thread:$0]  %s314, 16, %s4, [#allocation10]
    $region33: #{tpu_custom_call.1} parent=1 // pred_fallthru
      _
    // Predicated region
    $region34: #{tpu_custom_call.1} parent=1 // pred_check
      _
    $region35: #{tpu_custom_call.1} parent=1 // pred_check_branch
      %318 = sbr.rel (0) target = $region37
    $region36: #{tpu_custom_call.1} parent=1 // pred_region
      %319 = dma.done [#allocation4], 16
    $region37: #{tpu_custom_call.1} parent=1 // pred_fallthru
      _
    // Predicated region
    $region38: #{tpu_custom_call.1} parent=1 // pred_check
      _
    $region39: #{tpu_custom_call.1} parent=1 // pred_check_branch
      %321 = sbr.rel (0) target = $region41
    $region40: #{tpu_custom_call.1} parent=1 // pred_region
      %322 = dma.done [#allocation10], 16
    $region41: #{tpu_custom_call.1} parent=1 // pred_fallthru
      _
    %323 = vsyncpa [#allocation3], 1
    %324 = vsyncpa [#allocation6], 1
    %325 = vsyncpa [#allocation4], 1
    %326 = vsyncpa [#allocation10], 1

</llo_original>
